<compile_context>
chip_gen: v6e
topology: v6e:2x2x1
jax: 0.10.0
libtpu: 0.0.40
codegen_flags: <defaults>
</compile_context>

<pallas_src>
import functools
import math

import jax
import jax.numpy as jnp
from jax.experimental import pallas as pl
from jax.experimental.pallas import tpu as pltpu


_VMEM_LIMIT = 48 * 1024 * 1024   # safe on v5e/v6e (128 MiB) and v7x (64 MiB, headroom left)


def _tile(dim, target, align):
    """Largest tile <= target that is a multiple of `align` and divides `dim`.
    Falls back to the full dim (block == full array dim is always legal)."""
    if dim <= target:
        return dim
    t = (target // align) * align
    while t >= align:
        if dim % t == 0:
            return t
        t -= align
    return dim
    # TODO(synk): dims with no aligned divisor (e.g. vocab=50257) fall back to the full
    # dim; pad such dims or switch to a cdiv grid with masked stores for production.


# ------------------------------------------------------------------ kernels --

def linear_kernel(x_ref, w_ref, b_ref, o_ref, acc_ref, *, activation):
    # x: (tm, tk), w: (tk, tn), b: (1, tn) f32, acc: (tm, tn) f32
    @pl.when(pl.program_id(2) == 0)
    def _():
        acc_ref[...] = jnp.zeros_like(acc_ref)

    a = x_ref[...]
    if a.dtype != jnp.bfloat16:          # cast inside the kernel (no extra HBM pass)
        a = a.astype(jnp.bfloat16)
    w = w_ref[...]
    if w.dtype != jnp.bfloat16:
        w = w.astype(jnp.bfloat16)

    acc_ref[...] += jnp.dot(a, w, preferred_element_type=jnp.float32)

    @pl.when(pl.program_id(2) == pl.num_programs(2) - 1)
    def _():
        y = acc_ref[...] + b_ref[...]
        if activation == "relu":
            y = jnp.maximum(y, 0.0)
        o_ref[...] = y.astype(o_ref.dtype)


def add_ln_kernel(y_ref, r_ref, g_ref, b_ref, o_ref, *, eps):
    # fused residual add + LayerNorm over rows; block (tm, E) with full E; f32 math inside
    x = y_ref[...].astype(jnp.float32) + r_ref[...].astype(jnp.float32)
    mu = jnp.mean(x, axis=-1, keepdims=True)
    var = jnp.mean((x - mu) * (x - mu), axis=-1, keepdims=True)
    xhat = (x - mu) * jax.lax.rsqrt(var + eps)
    o_ref[...] = (xhat * g_ref[...] + b_ref[...]).astype(o_ref.dtype)


def flash_attn_kernel(q_ref, k_ref, v_ref, o_ref, m_ref, l_ref, acc_ref,
                      *, scale, tq, tk):
    # one (batch n, head h, q-tile qi, kv-tile ki) step; q/k/v blocks are (1, t, Dh) bf16
    qi = pl.program_id(2)
    ki = pl.program_id(3)

    @pl.when(ki == 0)
    def _():
        m_ref[...] = jnp.full_like(m_ref, -jnp.inf)
        l_ref[...] = jnp.zeros_like(l_ref)
        acc_ref[...] = jnp.zeros_like(acc_ref)

    # Skip fully-masked KV tiles: a tile contributes only if its first column is
    # <= the last row of this q tile (causal).  Skipped steps also re-use the
    # previous (clamped) K/V block index -> no new DMA either.
    @pl.when(ki * tk <= qi * tq + tq - 1)
    def _():
        q = q_ref[0]                                  # (tq, Dh) bf16
        k = k_ref[0]                                  # (tk, Dh) bf16
        v = v_ref[0]                                  # (tk, Dh) bf16

        # scores: contract on Dh without transposing K
        s = jax.lax.dot_general(q, k, (((1,), (1,)), ((), ())),
                                preferred_element_type=jnp.float32) * scale

        # in-kernel causal mask from absolute row/col indices (no DMA'd (S,S) mask)
        rows = qi * tq + jax.lax.broadcasted_iota(jnp.int32, (tq, tk), 0)
        cols = ki * tk + jax.lax.broadcasted_iota(jnp.int32, (tq, tk), 1)
        s = jnp.where(rows >= cols, s, -1e9)

        m_prev = m_ref[...]
        m_new = jnp.maximum(m_prev, jnp.max(s, axis=-1, keepdims=True))
        alpha = jnp.exp(m_prev - m_new)
        p = jnp.exp(s - m_new)

        l_ref[...] = alpha * l_ref[...] + jnp.sum(p, axis=-1, keepdims=True)
        acc_ref[...] = alpha * acc_ref[...] + jax.lax.dot_general(
            p.astype(v.dtype), v, (((1,), (0,)), ((), ())),
            preferred_element_type=jnp.float32)
        m_ref[...] = m_new

    @pl.when(ki == pl.num_programs(3) - 1)
    def _():
        o_ref[0] = (acc_ref[...] *
                    pl.reciprocal(l_ref[...], approx=True)).astype(o_ref.dtype)


# ----------------------------------------------------------------- wrappers --

def linear(x, w, b, activation=None, out_dtype=jnp.bfloat16,
           tm_target=512, tn_target=1024, tk_target=1024):
    M, K = x.shape
    _, Nout = w.shape
    b = b.astype(jnp.float32)

    tm = _tile(M, tm_target, 16)       # 16-row align: bf16 packs 2 rows/sublane
    tn = _tile(Nout, tn_target, 128)
    tk = _tile(K, tk_target, 128)

    kern = functools.partial(linear_kernel, activation=activation)
    return pl.pallas_call(
        kern,
        out_shape=jax.ShapeDtypeStruct((M, Nout), out_dtype),
        grid=(M // tm, Nout // tn, K // tk),
        in_specs=[
            pl.BlockSpec((tm, tk), lambda i, j, k: (i, k)),
            pl.BlockSpec((tk, tn), lambda i, j, k: (k, j)),
            pl.BlockSpec((1, tn), lambda i, j, k: (0, j)),
        ],
        out_specs=pl.BlockSpec((tm, tn), lambda i, j, k: (i, j)),
        scratch_shapes=[pltpu.VMEM((tm, tn), jnp.float32)],
        compiler_params=pltpu.CompilerParams(
            dimension_semantics=("parallel", "parallel", "arbitrary"),
            vmem_limit_bytes=_VMEM_LIMIT),
    )(x, w, b)


def add_layernorm(y, res, gamma, beta, eps=1e-5, vmem_budget=32 * 1024 * 1024):
    # layernorm(y + res) fused in one row-tiled kernel; emits bf16 (f32 math inside).
    M, E = y.shape
    # ~24 bytes/element covers double-buffered bf16 in/out tiles + f32 temporaries.
    tm_target = max(16, min(1024, (vmem_budget // (E * 24)) // 16 * 16))
    tm = _tile(M, tm_target, 16)
    kern = functools.partial(add_ln_kernel, eps=eps)
    return pl.pallas_call(
        kern,
        out_shape=jax.ShapeDtypeStruct((M, E), jnp.bfloat16),
        grid=(M // tm,),
        in_specs=[
            pl.BlockSpec((tm, E), lambda i: (i, 0)),
            pl.BlockSpec((tm, E), lambda i: (i, 0)),
            pl.BlockSpec((1, E), lambda i: (0, 0)),
            pl.BlockSpec((1, E), lambda i: (0, 0)),
        ],
        out_specs=pl.BlockSpec((tm, E), lambda i: (i, 0)),
        compiler_params=pltpu.CompilerParams(
            dimension_semantics=("parallel",),
            vmem_limit_bytes=_VMEM_LIMIT),
    )(y, res, gamma, beta)


def causal_attention(qkv, heads, *, tq_target=256, tk_target=512):
    # qkv: (N, S, 3E) bf16 (fused Q|K|V projections). Heads are sliced directly
    # out of the feature axis by the BlockSpecs -> no transposes in XLA.
    N, S, threeE = qkv.shape
    E = threeE // 3
    Dh = E // heads
    # (8,128) lane rule: head dim must be a 128 multiple (Dh=64 configs need padding).
    assert Dh % 128 == 0, "head dim must be a multiple of 128 for this kernel"
    tq = _tile(S, tq_target, 16)
    tk = _tile(S, tk_target, 16)
    nq, nk = S // tq, S // tk

    # Clamp the kv block index to the last block this q tile can see (causal);
    # out-of-range grid steps repeat the previous block index => no new DMA.
    def kv_block(qi, ki):
        return jnp.minimum(ki, (qi * tq + tq - 1) // tk)

    kern = functools.partial(flash_attn_kernel,
                             scale=1.0 / math.sqrt(Dh), tq=tq, tk=tk)
    return pl.pallas_call(
        kern,
        out_shape=jax.ShapeDtypeStruct((N, S, E), jnp.bfloat16),
        grid=(N, heads, nq, nk),
        in_specs=[
            pl.BlockSpec((1, tq, Dh), lambda n, h, qi, ki: (n, qi, h)),
            pl.BlockSpec((1, tk, Dh),
                         lambda n, h, qi, ki: (n, kv_block(qi, ki), heads + h)),
            pl.BlockSpec((1, tk, Dh),
                         lambda n, h, qi, ki: (n, kv_block(qi, ki), 2 * heads + h)),
        ],
        out_specs=pl.BlockSpec((1, tq, Dh), lambda n, h, qi, ki: (n, qi, h)),
        scratch_shapes=[
            pltpu.VMEM((tq, 1), jnp.float32),    # running max m
            pltpu.VMEM((tq, 1), jnp.float32),    # running sum l
            pltpu.VMEM((tq, Dh), jnp.float32),   # output accumulator
        ],
        compiler_params=pltpu.CompilerParams(
            dimension_semantics=("parallel", "parallel", "parallel", "arbitrary"),
            vmem_limit_bytes=_VMEM_LIMIT),
    )(qkv, qkv, qkv)


# -------------------------------------------------------------------- model --

def init_params(key, *, vocab_size, embed_size, num_layers, heads, ff_hidden, max_length):
    def nrm(k, shape, scale=0.02, dtype=jnp.bfloat16):
        return (scale * jax.random.normal(k, shape)).astype(dtype)

    keys = iter(jax.random.split(key, 3 + num_layers * 4))
    params = {
        "wte": nrm(next(keys), (vocab_size, embed_size), dtype=jnp.float32),
        "wpe": nrm(next(keys), (max_length, embed_size), dtype=jnp.float32),
        "fc_out_w": nrm(next(keys), (embed_size, vocab_size)),
        "fc_out_b": jnp.zeros((1, vocab_size), jnp.float32),
        "layers": [],
    }
    for _ in range(num_layers):
        layer = {
            # fused Q|K|V projection
            "w_qkv": nrm(next(keys), (embed_size, 3 * embed_size)),
            "b_qkv": jnp.zeros((1, 3 * embed_size), jnp.float32),
            "wo": nrm(next(keys), (embed_size, embed_size)),
            "bo": jnp.zeros((1, embed_size), jnp.float32),
            "ln1_g": jnp.ones((1, embed_size), jnp.float32),
            "ln1_b": jnp.zeros((1, embed_size), jnp.float32),
            "ff_w1": nrm(next(keys), (embed_size, ff_hidden)),
            "ff_b1": jnp.zeros((1, ff_hidden), jnp.float32),
            "ff_w2": nrm(next(keys), (ff_hidden, embed_size)),
            "ff_b2": jnp.zeros((1, embed_size), jnp.float32),
            "ln2_g": jnp.ones((1, embed_size), jnp.float32),
            "ln2_b": jnp.zeros((1, embed_size), jnp.float32),
        }
        params["layers"].append(layer)
    return params


def gpt_forward(params, token_ids, mask, *, heads):
    # token_ids: int32 (N, S); mask: None -> causal tril (generated in-kernel)
    # TODO(synk): arbitrary user-supplied masks not implemented (causal only)
    assert mask is None, "only the mask=None causal path is implemented"

    N, S = token_ids.shape
    E = params["wte"].shape[1]

    # embeddings (gather = glue in plain JAX); dropout == identity at inference.
    # Residual / activation stream is kept bf16 end-to-end (f32 math inside kernels).
    tok = params["wte"][token_ids]                               # (N, S, E)
    pos = params["wpe"][jnp.arange(S)][None, :, :]               # (1, S, E)
    x2 = (tok + pos).astype(jnp.bfloat16).reshape(N * S, E)      # (M, E) bf16

    for lyr in params["layers"]:
        # ---- multi-head causal self-attention (fused QKV + flash kernel) ----
        qkv = linear(x2, lyr["w_qkv"], lyr["b_qkv"])              # bf16
        attn = causal_attention(qkv.reshape(N, S, 3 * E), heads)  # (N, S, E) bf16
        proj = linear(attn.reshape(N * S, E), lyr["wo"], lyr["bo"])

        # post-LN: norm(attn + x)  (residual add fused into the LN kernel)
        x2 = add_layernorm(proj, x2, lyr["ln1_g"], lyr["ln1_b"])

        # ---- feed forward -----------------------------------------------------
        h = linear(x2, lyr["ff_w1"], lyr["ff_b1"], activation="relu")
        h = linear(h, lyr["ff_w2"], lyr["ff_b2"])
        x2 = add_layernorm(h, x2, lyr["ln2_g"], lyr["ln2_b"])

    # LM head (tiled over the vocab axis inside linear()); bf16 logits halve writeback.
    logits = linear(x2, params["fc_out_w"], params["fc_out_b"])
    return logits.reshape(N, S, -1)


# --------------------------------------------------------------------- main --

if __name__ == "__main__":
    # small config consistent with the module's forward (Dh = E/heads = 128)
    N, S = 2, 16
    embed_size, heads, ff_hidden = 256, 2, 512
    num_layers, vocab_size, max_length = 2, 512, 32

    key = jax.random.PRNGKey(0)
    pkey, dkey = jax.random.split(key)
    params = init_params(pkey, vocab_size=vocab_size, embed_size=embed_size,
                         num_layers=num_layers, heads=heads,
                         ff_hidden=ff_hidden, max_length=max_length)

    token_ids = jax.random.randint(dkey, (N, S), 0, vocab_size, dtype=jnp.int32)

    logits = gpt_forward(params, token_ids, mask=None, heads=heads)
    jax.block_until_ready(logits)
    assert logits.shape == (N, S, vocab_size)
    assert bool(jnp.all(jnp.isfinite(logits.astype(jnp.float32))))
    print("KERNEL_OK")
</pallas_src>

<mosaic_0001>
module attributes {stable_mosaic.version = 11 : i64} {
  func.func @linear_kernel(%arg0: i32, %arg1: i32, %arg2: i32, %arg3: memref<32x256xbf16, #tpu.memory_space<vmem>>, %arg4: memref<256x768xbf16, #tpu.memory_space<vmem>>, %arg5: memref<1x768xf32, #tpu.memory_space<vmem>>, %arg6: memref<32x768xbf16, #tpu.memory_space<vmem>>, %arg7: memref<32x768xf32, #tpu.memory_space<vmem>>) attributes {dimension_semantics = [#tpu.dimension_semantics<parallel>, #tpu.dimension_semantics<parallel>, #tpu.dimension_semantics<arbitrary>], iteration_bounds = array<i64: 1, 1, 1>, scalar_prefetch = 0 : i64, scratch_operands = 1 : i64, tpu.core_type = #tpu.core_type<tc>, window_params = [{transform_indices = @transform_0, window_bounds = array<i64: 32, 256>}, {transform_indices = @transform_1, window_bounds = array<i64: 256, 768>}, {transform_indices = @transform_2, window_bounds = array<i64: 1, 768>}, {transform_indices = @transform_3, window_bounds = array<i64: 32, 768>}]} {
    %c0_i32 = arith.constant 0 : i32
    %0 = arith.cmpi eq, %arg2, %c0_i32 : i32
    %1 = arith.extui %0 : i1 to i32
    %c0_i32_0 = arith.constant 0 : i32
    %2 = arith.cmpi ne, %1, %c0_i32_0 : i32
    scf.if %2 {
      %cst_10 = arith.constant 0.000000e+00 : f32
      %12 = vector.broadcast %cst_10 : f32 to vector<32x768xf32>
      %c0_11 = arith.constant 0 : index
      %c0_12 = arith.constant 0 : index
      %13 = vector.load %arg7[%c0_11, %c0_12] : memref<32x768xf32, #tpu.memory_space<vmem>>, vector<32x768xf32>
      tpu.vector_store %arg7[%c0_11, %c0_12], %12 {strides = array<i32>} : memref<32x768xf32, #tpu.memory_space<vmem>>, vector<32x768xf32>,
    } else {
    }
    %c0 = arith.constant 0 : index
    %c0_1 = arith.constant 0 : index
    %3 = vector.load %arg3[%c0, %c0_1] : memref<32x256xbf16, #tpu.memory_space<vmem>>, vector<32x256xbf16>
    %c0_2 = arith.constant 0 : index
    %c0_3 = arith.constant 0 : index
    %4 = vector.load %arg4[%c0_2, %c0_3] : memref<256x768xbf16, #tpu.memory_space<vmem>>, vector<256x768xbf16>
    %c0_4 = arith.constant 0 : index
    %c0_5 = arith.constant 0 : index
    %5 = vector.load %arg7[%c0_4, %c0_5] : memref<32x768xf32, #tpu.memory_space<vmem>>, vector<32x768xf32>
    %cst = arith.constant dense<0.000000e+00> : vector<32x768xf32>
    %6 = tpu.matmul %3, %4, %cst {dimension_numbers = #tpu.dot_dimension_numbers<[1], [0], [0], [1], [0, 0, 1, 1], [], []>} : vector<32x256xbf16>, vector<256x768xbf16>, vector<32x768xf32> -> vector<32x768xf32>
    %7 = arith.addf %5, %6 : vector<32x768xf32>
    %c0_6 = arith.constant 0 : index
    %c0_7 = arith.constant 0 : index
    %8 = vector.load %arg7[%c0_6, %c0_7] : memref<32x768xf32, #tpu.memory_space<vmem>>, vector<32x768xf32>
    tpu.vector_store %arg7[%c0_6, %c0_7], %7 {strides = array<i32>} : memref<32x768xf32, #tpu.memory_space<vmem>>, vector<32x768xf32>,
    %c0_i32_8 = arith.constant 0 : i32
    %9 = arith.cmpi eq, %arg2, %c0_i32_8 : i32
    %10 = arith.extui %9 : i1 to i32
    %c0_i32_9 = arith.constant 0 : i32
    %11 = arith.cmpi ne, %10, %c0_i32_9 : i32
    scf.if %11 {
      %c0_10 = arith.constant 0 : index
      %c0_11 = arith.constant 0 : index
      %12 = vector.load %arg7[%c0_10, %c0_11] : memref<32x768xf32, #tpu.memory_space<vmem>>, vector<32x768xf32>
      %c0_12 = arith.constant 0 : index
      %c0_13 = arith.constant 0 : index
      %13 = vector.load %arg5[%c0_12, %c0_13] : memref<1x768xf32, #tpu.memory_space<vmem>>, vector<1x768xf32>
      %14 = vector.broadcast %13 : vector<1x768xf32> to vector<32x768xf32>
      %15 = arith.addf %12, %14 : vector<32x768xf32>
      %16 = arith.truncf %15 : vector<32x768xf32> to vector<32x768xbf16>
      %c0_14 = arith.constant 0 : index
      %c0_15 = arith.constant 0 : index
      %17 = vector.load %arg6[%c0_14, %c0_15] : memref<32x768xbf16, #tpu.memory_space<vmem>>, vector<32x768xbf16>
      tpu.vector_store %arg6[%c0_14, %c0_15], %16 {strides = array<i32>} : memref<32x768xbf16, #tpu.memory_space<vmem>>, vector<32x768xbf16>,
    } else {
    }
    return
  }
  func.func @transform_0(%arg0: i32, %arg1: i32, %arg2: i32) -> (i32, i32) {
    %c0_i32 = arith.constant 0 : i32
    return %arg0, %arg2 : i32, i32
  }
  func.func @transform_1(%arg0: i32, %arg1: i32, %arg2: i32) -> (i32, i32) {
    %c0_i32 = arith.constant 0 : i32
    return %arg2, %arg1 : i32, i32
  }
  func.func @transform_2(%arg0: i32, %arg1: i32, %arg2: i32) -> (i32, i32) {
    %c0_i32 = arith.constant 0 : i32
    %c0_i32_0 = arith.constant 0 : i32
    return %c0_i32, %arg1 : i32, i32
  }
  func.func @transform_3(%arg0: i32, %arg1: i32, %arg2: i32) -> (i32, i32) {
    %c0_i32 = arith.constant 0 : i32
    return %arg0, %arg1 : i32, i32
  }
}

</mosaic_0001>

<llo_original>
// kernel: tpu_custom_call.1
$region0: #{tpu_custom_call.1}
  #allocation0 [shape = 'u32[]', space=smem, size = 0x4, offset = 0x4, fixed_abs, tag = 'smem constant byte address 0x4 - core index']
  #allocation1 [shape = 'u32[144,128]{1,0:T(1,128)}', space=vmem, size = 0x12000, scoped, tag = 'internal scratch']
  #allocation2 [shape = 'f32[32,768]{1,0:T(8,128)}', space=vmem, size = 0x18000, scoped, tag = 'scratch operand']
  %s0 = inlined_call_operand.hbm [shape: bf16[32,256], index: 0, kind: input, shape index: {}]
  %s1 = inlined_call_operand.hbm [shape: bf16[256,768], index: 1, kind: input, shape index: {}]
  %s2 = inlined_call_operand.hbm [shape: f32[1,768], index: 2, kind: input, shape index: {}]
  %s3 = inlined_call_operand.hbm [shape: bf16[32,768], index: 3, kind: output, shape index: {}]
  %s4 = sld [smem:[#allocation0]]
  $region42: #{tpu_custom_call.1} parent=0
    _
  %s6 = ssub.s32 1, %s4
  %s7 = scalar_select 0, %s6, %s4
  $region1: #{tpu_custom_call.1} parent=0
    #allocation3 [shape = 'u8[16384]{0}', space=vmem, size = 0x4000, scoped, tag = 'input window, operand 0, single buffered']
    #allocation4 [shape = 's32[1]{0}', space=sflag, size = 0x4, scoped, tag = 'scoped memory for tpu_custom_call.1']
    #allocation5 [shape = 's32[1]{0}', space=sflag, size = 0x4, scoped, tag = 'scoped memory for tpu_custom_call.1']
    #allocation6 [shape = 'u8[393216]{0}', space=vmem, size = 0x60000, scoped, tag = 'input window, operand 1, single buffered']
    #allocation7 [shape = 's32[1]{0}', space=sflag, size = 0x4, scoped, tag = 'scoped memory for tpu_custom_call.1']
    #allocation8 [shape = 'u8[3072]{0}', space=vmem, size = 0xc00, scoped, tag = 'input window, operand 2, single buffered']
    #allocation9 [shape = 'u8[49152]{0}', space=vmem, size = 0xc000, scoped, tag = 'output window, operand 0, single buffered']
    %8 = vsyncpa [#allocation4], 0
    %9 = vsyncpa [#allocation7], 0
    %10 = vsyncpa [#allocation5], 0
    // Predicated region
    $region2: #{tpu_custom_call.1} parent=1 // pred_check
      _
    $region3: #{tpu_custom_call.1} parent=1 // pred_check_branch
      %12 = sbr.rel (0) target = $region5
    $region4: #{tpu_custom_call.1} parent=1 // pred_region
      %s14 = ssub.s32 512, 512
      %15 = vsyncadd [#allocation4], %s14
      %s16 = sshll.u32 [#allocation3], 4
      %s17 = int_to_ptr.vmem [resolvable:$true] %s16
      %22 = dma.hbm_to_vmem [thread:$0]  %s0, 512, %s17, [#allocation4], 128, 128, 8
    $region5: #{tpu_custom_call.1} parent=1 // pred_fallthru
      _
    // Predicated region
    $region6: #{tpu_custom_call.1} parent=1 // pred_check
      _
    $region7: #{tpu_custom_call.1} parent=1 // pred_check_branch
      %24 = sbr.rel (0) target = $region9
    $region8: #{tpu_custom_call.1} parent=1 // pred_region
      %s26 = ssub.s32 12288, 12288
      %27 = vsyncadd [#allocation7], %s26
      %s28 = sshll.u32 [#allocation6], 4
      %s29 = int_to_ptr.vmem [resolvable:$true] %s28
      %34 = dma.hbm_to_vmem [thread:$0]  %s1, 12288, %s29, [#allocation7], 384, 384, 24
    $region9: #{tpu_custom_call.1} parent=1 // pred_fallthru
      _
    // Predicated region
    $region10: #{tpu_custom_call.1} parent=1 // pred_check
      _
    $region11: #{tpu_custom_call.1} parent=1 // pred_check_branch
      %36 = sbr.rel (0) target = $region13
    $region12: #{tpu_custom_call.1} parent=1 // pred_region
      %s38 = ssub.s32 96, 96
      %39 = vsyncadd [#allocation7], %s38
      %s41 = sshll.u32 [#allocation8], 4
      %s42 = int_to_ptr.vmem [resolvable:$true] %s41
      %44 = dma.hbm_to_vmem [thread:$0]  %s2, 96, %s42, [#allocation7]
    $region13: #{tpu_custom_call.1} parent=1 // pred_fallthru
      _
    // Predicated region
    $region14: #{tpu_custom_call.1} parent=1 // pred_check
      _
    $region15: #{tpu_custom_call.1} parent=1 // pred_check_branch
      %46 = sbr.rel (0) target = $region17
    $region16: #{tpu_custom_call.1} parent=1 // pred_region
      %47 = dma.done [#allocation4], 512
    $region17: #{tpu_custom_call.1} parent=1 // pred_fallthru
      _
    // Predicated region
    $region18: #{tpu_custom_call.1} parent=1 // pred_check
      _
    $region19: #{tpu_custom_call.1} parent=1 // pred_check_branch
      %49 = sbr.rel (0) target = $region21
    $region20: #{tpu_custom_call.1} parent=1 // pred_region
      %50 = dma.done [#allocation7], 12288
    $region21: #{tpu_custom_call.1} parent=1 // pred_fallthru
      _
    // Predicated region
    $region22: #{tpu_custom_call.1} parent=1 // pred_check
      _
    $region23: #{tpu_custom_call.1} parent=1 // pred_check_branch
      %52 = sbr.rel (0) target = $region25
    $region24: #{tpu_custom_call.1} parent=1 // pred_region
      %53 = dma.done [#allocation7], 96
    $region25: #{tpu_custom_call.1} parent=1 // pred_fallthru
      _
    %p54 = scmp.eq.s32.totalorder 0, 0
    // Predicated region
    $region26: #{tpu_custom_call.1} parent=1 // pred_check
      %p55 = pneg %p54
    $region27: #{tpu_custom_call.1} parent=1 // pred_check_branch
      %57 = sbr.rel (%p55) target = $region29
    $region28: #{tpu_custom_call.1} parent=1 // pred_region
      %58 = vst [vmem:[#allocation2] sm:$0xff] 0.0
      %59 = vst [vmem:[#allocation2 + $0x8] sm:$0xff] 0.0
      %60 = vst [vmem:[#allocation2 + $0x10] sm:$0xff] 0.0
      %61 = vst [vmem:[#allocation2 + $0x18] sm:$0xff] 0.0
      %62 = vst [vmem:[#allocation2 + $0x20] sm:$0xff] 0.0
      %63 = vst [vmem:[#allocation2 + $0x28] sm:$0xff] 0.0
      %64 = vst [vmem:[#allocation2 + $0x30] sm:$0xff] 0.0
      %65 = vst [vmem:[#allocation2 + $0x38] sm:$0xff] 0.0
      %66 = vst [vmem:[#allocation2 + $0x40] sm:$0xff] 0.0
      %67 = vst [vmem:[#allocation2 + $0x48] sm:$0xff] 0.0
      %68 = vst [vmem:[#allocation2 + $0x50] sm:$0xff] 0.0
      %69 = vst [vmem:[#allocation2 + $0x58] sm:$0xff] 0.0
      %70 = vst [vmem:[#allocation2 + $0x60] sm:$0xff] 0.0
      %71 = vst [vmem:[#allocation2 + $0x68] sm:$0xff] 0.0
      %72 = vst [vmem:[#allocation2 + $0x70] sm:$0xff] 0.0
      %73 = vst [vmem:[#allocation2 + $0x78] sm:$0xff] 0.0
      %74 = vst [vmem:[#allocation2 + $0x80] sm:$0xff] 0.0
      %75 = vst [vmem:[#allocation2 + $0x88] sm:$0xff] 0.0
      %76 = vst [vmem:[#allocation2 + $0x90] sm:$0xff] 0.0
      %77 = vst [vmem:[#allocation2 + $0x98] sm:$0xff] 0.0
      %78 = vst [vmem:[#allocation2 + $0xa0] sm:$0xff] 0.0
      %79 = vst [vmem:[#allocation2 + $0xa8] sm:$0xff] 0.0
      %80 = vst [vmem:[#allocation2 + $0xb0] sm:$0xff] 0.0
      %81 = vst [vmem:[#allocation2 + $0xb8] sm:$0xff] 0.0
    $region29: #{tpu_custom_call.1} parent=1 // pred_fallthru
      _
    %v82 = vld [vmem:[#allocation3] sm:$0xff]
    %v83 = vld [vmem:[#allocation3 + $0x8] sm:$0xff]
    %v84 = vld [vmem:[#allocation3 + $0x10] sm:$0xff]
    %v85 = vld [vmem:[#allocation3 + $0x18] sm:$0xff]
    %v86 = vld [vmem:[#allocation6] sm:$0xff]
    %v87 = vld [vmem:[#allocation6 + $0x8] sm:$0xff]
    %v88 = vld [vmem:[#allocation6 + $0x10] sm:$0xff]
    %v89 = vld [vmem:[#allocation6 + $0x18] sm:$0xff]
    %v90 = vld [vmem:[#allocation6 + $0x20] sm:$0xff]
    %v91 = vld [vmem:[#allocation6 + $0x28] sm:$0xff]
    %v92 = vld [vmem:[#allocation6 + $0x30] sm:$0xff]
    %v93 = vld [vmem:[#allocation6 + $0x38] sm:$0xff]
    %v94 = vld [vmem:[#allocation6 + $0x40] sm:$0xff]
    %v95 = vld [vmem:[#allocation6 + $0x48] sm:$0xff]
    %v96 = vld [vmem:[#allocation6 + $0x50] sm:$0xff]
    %v97 = vld [vmem:[#allocation6 + $0x58] sm:$0xff]
    %v98 = vld [vmem:[#allocation6 + $0x60] sm:$0xff]
    %v99 = vld [vmem:[#allocation6 + $0x68] sm:$0xff]
    %v100 = vld [vmem:[#allocation6 + $0x70] sm:$0xff]
    %v101 = vld [vmem:[#allocation6 + $0x78] sm:$0xff]
    %v102 = vld [vmem:[#allocation6 + $0x80] sm:$0xff]
    %v103 = vld [vmem:[#allocation6 + $0x88] sm:$0xff]
    %v104 = vld [vmem:[#allocation6 + $0x90] sm:$0xff]
    %v105 = vld [vmem:[#allocation6 + $0x98] sm:$0xff]
    %v106 = vld [vmem:[#allocation6 + $0xa0] sm:$0xff]
    %v107 = vld [vmem:[#allocation6 + $0xa8] sm:$0xff]
    %v108 = vld [vmem:[#allocation6 + $0xb0] sm:$0xff]
    %v109 = vld [vmem:[#allocation6 + $0xb8] sm:$0xff]
    %v110 = vld [vmem:[#allocation6 + $0xc0] sm:$0xff]
    %v111 = vld [vmem:[#allocation6 + $0xc8] sm:$0xff]
    %v112 = vld [vmem:[#allocation6 + $0xd0] sm:$0xff]
    %v113 = vld [vmem:[#allocation6 + $0xd8] sm:$0xff]
    %v114 = vld [vmem:[#allocation6 + $0xe0] sm:$0xff]
    %v115 = vld [vmem:[#allocation6 + $0xe8] sm:$0xff]
    %v116 = vld [vmem:[#allocation6 + $0xf0] sm:$0xff]
    %v117 = vld [vmem:[#allocation6 + $0xf8] sm:$0xff]
    %v118 = vld [vmem:[#allocation6 + $0x100] sm:$0xff]
    %v119 = vld [vmem:[#allocation6 + $0x108] sm:$0xff]
    %v120 = vld [vmem:[#allocation6 + $0x110] sm:$0xff]
    %v121 = vld [vmem:[#allocation6 + $0x118] sm:$0xff]
    %v122 = vld [vmem:[#allocation6 + $0x120] sm:$0xff]
    %v123 = vld [vmem:[#allocation6 + $0x128] sm:$0xff]
    %v124 = vld [vmem:[#allocation6 + $0x130] sm:$0xff]
    %v125 = vld [vmem:[#allocation6 + $0x138] sm:$0xff]
    %v126 = vld [vmem:[#allocation6 + $0x140] sm:$0xff]
    %v127 = vld [vmem:[#allocation6 + $0x148] sm:$0xff]
    %v128 = vld [vmem:[#allocation6 + $0x150] sm:$0xff]
    %v129 = vld [vmem:[#allocation6 + $0x158] sm:$0xff]
    %v130 = vld [vmem:[#allocation6 + $0x160] sm:$0xff]
    %v131 = vld [vmem:[#allocation6 + $0x168] sm:$0xff]
    %v132 = vld [vmem:[#allocation6 + $0x170] sm:$0xff]
    %v133 = vld [vmem:[#allocation6 + $0x178] sm:$0xff]
    %v134 = vld [vmem:[#allocation6 + $0x180] sm:$0xff]
    %v135 = vld [vmem:[#allocation6 + $0x188] sm:$0xff]
    %v136 = vld [vmem:[#allocation6 + $0x190] sm:$0xff]
    %v137 = vld [vmem:[#allocation6 + $0x198] sm:$0xff]
    %v138 = vld [vmem:[#allocation6 + $0x1a0] sm:$0xff]
    %v139 = vld [vmem:[#allocation6 + $0x1a8] sm:$0xff]
    %v140 = vld [vmem:[#allocation6 + $0x1b0] sm:$0xff]
    %v141 = vld [vmem:[#allocation6 + $0x1b8] sm:$0xff]
    %v142 = vld [vmem:[#allocation6 + $0x1c0] sm:$0xff]
    %v143 = vld [vmem:[#allocation6 + $0x1c8] sm:$0xff]
    %v144 = vld [vmem:[#allocation6 + $0x1d0] sm:$0xff]
    %v145 = vld [vmem:[#allocation6 + $0x1d8] sm:$0xff]
    %v146 = vld [vmem:[#allocation6 + $0x1e0] sm:$0xff]
    %v147 = vld [vmem:[#allocation6 + $0x1e8] sm:$0xff]
    %v148 = vld [vmem:[#allocation6 + $0x1f0] sm:$0xff]
    %v149 = vld [vmem:[#allocation6 + $0x1f8] sm:$0xff]
    %v150 = vld [vmem:[#allocation6 + $0x200] sm:$0xff]
    %v151 = vld [vmem:[#allocation6 + $0x208] sm:$0xff]
    %v152 = vld [vmem:[#allocation6 + $0x210] sm:$0xff]
    %v153 = vld [vmem:[#allocation6 + $0x218] sm:$0xff]
    %v154 = vld [vmem:[#allocation6 + $0x220] sm:$0xff]
    %v155 = vld [vmem:[#allocation6 + $0x228] sm:$0xff]
    %v156 = vld [vmem:[#allocation6 + $0x230] sm:$0xff]
    %v157 = vld [vmem:[#allocation6 + $0x238] sm:$0xff]
    %v158 = vld [vmem:[#allocation6 + $0x240] sm:$0xff]
    %v159 = vld [vmem:[#allocation6 + $0x248] sm:$0xff]
    %v160 = vld [vmem:[#allocation6 + $0x250] sm:$0xff]
    %v161 = vld [vmem:[#allocation6 + $0x258] sm:$0xff]
    %v162 = vld [vmem:[#allocation6 + $0x260] sm:$0xff]
    %v163 = vld [vmem:[#allocation6 + $0x268] sm:$0xff]
    %v164 = vld [vmem:[#allocation6 + $0x270] sm:$0xff]
    %v165 = vld [vmem:[#allocation6 + $0x278] sm:$0xff]
    %v166 = vld [vmem:[#allocation6 + $0x280] sm:$0xff]
    %v167 = vld [vmem:[#allocation6 + $0x288] sm:$0xff]
    %v168 = vld [vmem:[#allocation6 + $0x290] sm:$0xff]
    %v169 = vld [vmem:[#allocation6 + $0x298] sm:$0xff]
    %v170 = vld [vmem:[#allocation6 + $0x2a0] sm:$0xff]
    %v171 = vld [vmem:[#allocation6 + $0x2a8] sm:$0xff]
    %v172 = vld [vmem:[#allocation6 + $0x2b0] sm:$0xff]
    %v173 = vld [vmem:[#allocation6 + $0x2b8] sm:$0xff]
    %v174 = vld [vmem:[#allocation6 + $0x2c0] sm:$0xff]
    %v175 = vld [vmem:[#allocation6 + $0x2c8] sm:$0xff]
    %v176 = vld [vmem:[#allocation6 + $0x2d0] sm:$0xff]
    %v177 = vld [vmem:[#allocation6 + $0x2d8] sm:$0xff]
    %v178 = vld [vmem:[#allocation6 + $0x2e0] sm:$0xff]
    %v179 = vld [vmem:[#allocation6 + $0x2e8] sm:$0xff]
    %v180 = vld [vmem:[#allocation6 + $0x2f0] sm:$0xff]
    %v181 = vld [vmem:[#allocation6 + $0x2f8] sm:$0xff]
    %v182 = vld [vmem:[#allocation2] sm:$0xff]
    %v183 = vld [vmem:[#allocation2 + $0x8] sm:$0xff]
    %v184 = vld [vmem:[#allocation2 + $0x10] sm:$0xff]
    %v185 = vld [vmem:[#allocation2 + $0x18] sm:$0xff]
    %v186 = vld [vmem:[#allocation2 + $0x20] sm:$0xff]
    %v187 = vld [vmem:[#allocation2 + $0x28] sm:$0xff]
    %v188 = vld [vmem:[#allocation2 + $0x30] sm:$0xff]
    %v189 = vld [vmem:[#allocation2 + $0x38] sm:$0xff]
    %v190 = vld [vmem:[#allocation2 + $0x40] sm:$0xff]
    %v191 = vld [vmem:[#allocation2 + $0x48] sm:$0xff]
    %v192 = vld [vmem:[#allocation2 + $0x50] sm:$0xff]
    %v193 = vld [vmem:[#allocation2 + $0x58] sm:$0xff]
    %v194 = vld [vmem:[#allocation2 + $0x60] sm:$0xff]
    %v195 = vld [vmem:[#allocation2 + $0x68] sm:$0xff]
    %v196 = vld [vmem:[#allocation2 + $0x70] sm:$0xff]
    %v197 = vld [vmem:[#allocation2 + $0x78] sm:$0xff]
    %v198 = vld [vmem:[#allocation2 + $0x80] sm:$0xff]
    %v199 = vld [vmem:[#allocation2 + $0x88] sm:$0xff]
    %v200 = vld [vmem:[#allocation2 + $0x90] sm:$0xff]
    %v201 = vld [vmem:[#allocation2 + $0x98] sm:$0xff]
    %v202 = vld [vmem:[#allocation2 + $0xa0] sm:$0xff]
    %v203 = vld [vmem:[#allocation2 + $0xa8] sm:$0xff]
    %v204 = vld [vmem:[#allocation2 + $0xb0] sm:$0xff]
    %v205 = vld [vmem:[#allocation2 + $0xb8] sm:$0xff]
    %v210 = vunpack.c.l.b16 %v82
    %v211 = vunpack.c.h.b16 %v82
    %v212 = vunpack.c.l.b16 %v83
    %v213 = vunpack.c.h.b16 %v83
    %v214 = vunpack.c.l.b16 %v84
    %v215 = vunpack.c.h.b16 %v84
    %v216 = vunpack.c.l.b16 %v85
    %v217 = vunpack.c.h.b16 %v85
    %v218 = vpack.c.b16 %v212, %v210
    %v219 = vpack.c.b16 %v213, %v211
    %v220 = vpack.c.b16 %v216, %v214
    %v221 = vpack.c.b16 %v217, %v215
    %v322 = vunpack.c.l.b16 %v86
    %v323 = vunpack.c.h.b16 %v86
    %v324 = vunpack.c.l.b16 %v87
    %v325 = vunpack.c.h.b16 %v87
    %v326 = vunpack.c.l.b16 %v88
    %v327 = vunpack.c.h.b16 %v88
    %v328 = vunpack.c.l.b16 %v89
    %v329 = vunpack.c.h.b16 %v89
    %v330 = vunpack.c.l.b16 %v90
    %v331 = vunpack.c.h.b16 %v90
    %v332 = vunpack.c.l.b16 %v91
    %v333 = vunpack.c.h.b16 %v91
    %v334 = vunpack.c.l.b16 %v92
    %v335 = vunpack.c.h.b16 %v92
    %v336 = vunpack.c.l.b16 %v93
    %v337 = vunpack.c.h.b16 %v93
    %v338 = vunpack.c.l.b16 %v94
    %v339 = vunpack.c.h.b16 %v94
    %v340 = vunpack.c.l.b16 %v95
    %v341 = vunpack.c.h.b16 %v95
    %v342 = vunpack.c.l.b16 %v96
    %v343 = vunpack.c.h.b16 %v96
    %v344 = vunpack.c.l.b16 %v97
    %v345 = vunpack.c.h.b16 %v97
    %v346 = vunpack.c.l.b16 %v98
    %v347 = vunpack.c.h.b16 %v98
    %v348 = vunpack.c.l.b16 %v99
    %v349 = vunpack.c.h.b16 %v99
    %v350 = vunpack.c.l.b16 %v100
    %v351 = vunpack.c.h.b16 %v100
    %v352 = vunpack.c.l.b16 %v101
    %v353 = vunpack.c.h.b16 %v101
    %v354 = vunpack.c.l.b16 %v102
    %v355 = vunpack.c.h.b16 %v102
    %v356 = vunpack.c.l.b16 %v103
    %v357 = vunpack.c.h.b16 %v103
    %v358 = vunpack.c.l.b16 %v104
    %v359 = vunpack.c.h.b16 %v104
    %v360 = vunpack.c.l.b16 %v105
    %v361 = vunpack.c.h.b16 %v105
    %v362 = vunpack.c.l.b16 %v106
    %v363 = vunpack.c.h.b16 %v106
    %v364 = vunpack.c.l.b16 %v107
    %v365 = vunpack.c.h.b16 %v107
    %v366 = vunpack.c.l.b16 %v108
    %v367 = vunpack.c.h.b16 %v108
    %v368 = vunpack.c.l.b16 %v109
    %v369 = vunpack.c.h.b16 %v109
    %v370 = vunpack.c.l.b16 %v110
    %v371 = vunpack.c.h.b16 %v110
    %v372 = vunpack.c.l.b16 %v111
    %v373 = vunpack.c.h.b16 %v111
    %v374 = vunpack.c.l.b16 %v112
    %v375 = vunpack.c.h.b16 %v112
    %v376 = vunpack.c.l.b16 %v113
    %v377 = vunpack.c.h.b16 %v113
    %v378 = vunpack.c.l.b16 %v114
    %v379 = vunpack.c.h.b16 %v114
    %v380 = vunpack.c.l.b16 %v115
    %v381 = vunpack.c.h.b16 %v115
    %v382 = vunpack.c.l.b16 %v116
    %v383 = vunpack.c.h.b16 %v116
    %v384 = vunpack.c.l.b16 %v117
    %v385 = vunpack.c.h.b16 %v117
    %v386 = vunpack.c.l.b16 %v118
    %v387 = vunpack.c.h.b16 %v118
    %v388 = vunpack.c.l.b16 %v119
    %v389 = vunpack.c.h.b16 %v119
    %v390 = vunpack.c.l.b16 %v120
    %v391 = vunpack.c.h.b16 %v120
    %v392 = vunpack.c.l.b16 %v121
    %v393 = vunpack.c.h.b16 %v121
    %v394 = vunpack.c.l.b16 %v122
    %v395 = vunpack.c.h.b16 %v122
    %v396 = vunpack.c.l.b16 %v123
    %v397 = vunpack.c.h.b16 %v123
    %v398 = vunpack.c.l.b16 %v124
    %v399 = vunpack.c.h.b16 %v124
    %v400 = vunpack.c.l.b16 %v125
    %v401 = vunpack.c.h.b16 %v125
    %v402 = vunpack.c.l.b16 %v126
    %v403 = vunpack.c.h.b16 %v126
    %v404 = vunpack.c.l.b16 %v127
    %v405 = vunpack.c.h.b16 %v127
    %v406 = vunpack.c.l.b16 %v128
    %v407 = vunpack.c.h.b16 %v128
    %v408 = vunpack.c.l.b16 %v129
    %v409 = vunpack.c.h.b16 %v129
    %v410 = vunpack.c.l.b16 %v130
    %v411 = vunpack.c.h.b16 %v130
    %v412 = vunpack.c.l.b16 %v131
    %v413 = vunpack.c.h.b16 %v131
    %v414 = vunpack.c.l.b16 %v132
    %v415 = vunpack.c.h.b16 %v132
    %v416 = vunpack.c.l.b16 %v133
    %v417 = vunpack.c.h.b16 %v133
    %v418 = vunpack.c.l.b16 %v134
    %v419 = vunpack.c.h.b16 %v134
    %v420 = vunpack.c.l.b16 %v135
    %v421 = vunpack.c.h.b16 %v135
    %v422 = vunpack.c.l.b16 %v136
    %v423 = vunpack.c.h.b16 %v136
    %v424 = vunpack.c.l.b16 %v137
    %v425 = vunpack.c.h.b16 %v137
    %v426 = vunpack.c.l.b16 %v138
    %v427 = vunpack.c.h.b16 %v138
    %v428 = vunpack.c.l.b16 %v139
    %v429 = vunpack.c.h.b16 %v139
    %v430 = vunpack.c.l.b16 %v140
    %v431 = vunpack.c.h.b16 %v140
    %v432 = vunpack.c.l.b16 %v141
    %v433 = vunpack.c.h.b16 %v141
    %v434 = vunpack.c.l.b16 %v142
    %v435 = vunpack.c.h.b16 %v142
    %v436 = vunpack.c.l.b16 %v143
    %v437 = vunpack.c.h.b16 %v143
    %v438 = vunpack.c.l.b16 %v144
    %v439 = vunpack.c.h.b16 %v144
    %v440 = vunpack.c.l.b16 %v145
    %v441 = vunpack.c.h.b16 %v145
    %v442 = vunpack.c.l.b16 %v146
    %v443 = vunpack.c.h.b16 %v146
    %v444 = vunpack.c.l.b16 %v147
    %v445 = vunpack.c.h.b16 %v147
    %v446 = vunpack.c.l.b16 %v148
    %v447 = vunpack.c.h.b16 %v148
    %v448 = vunpack.c.l.b16 %v149
    %v449 = vunpack.c.h.b16 %v149
    %v450 = vunpack.c.l.b16 %v150
    %v451 = vunpack.c.h.b16 %v150
    %v452 = vunpack.c.l.b16 %v151
    %v453 = vunpack.c.h.b16 %v151
    %v454 = vunpack.c.l.b16 %v152
    %v455 = vunpack.c.h.b16 %v152
    %v456 = vunpack.c.l.b16 %v153
    %v457 = vunpack.c.h.b16 %v153
    %v458 = vunpack.c.l.b16 %v154
    %v459 = vunpack.c.h.b16 %v154
    %v460 = vunpack.c.l.b16 %v155
    %v461 = vunpack.c.h.b16 %v155
    %v462 = vunpack.c.l.b16 %v156
    %v463 = vunpack.c.h.b16 %v156
    %v464 = vunpack.c.l.b16 %v157
    %v465 = vunpack.c.h.b16 %v157
    %v466 = vunpack.c.l.b16 %v158
    %v467 = vunpack.c.h.b16 %v158
    %v468 = vunpack.c.l.b16 %v159
    %v469 = vunpack.c.h.b16 %v159
    %v470 = vunpack.c.l.b16 %v160
    %v471 = vunpack.c.h.b16 %v160
    %v472 = vunpack.c.l.b16 %v161
    %v473 = vunpack.c.h.b16 %v161
    %v474 = vunpack.c.l.b16 %v162
    %v475 = vunpack.c.h.b16 %v162
    %v476 = vunpack.c.l.b16 %v163
    %v477 = vunpack.c.h.b16 %v163
    %v478 = vunpack.c.l.b16 %v164
    %v479 = vunpack.c.h.b16 %v164
    %v480 = vunpack.c.l.b16 %v165
    %v481 = vunpack.c.h.b16 %v165
    %v482 = vunpack.c.l.b16 %v166
    %v483 = vunpack.c.h.b16 %v166
    %v484 = vunpack.c.l.b16 %v167
    %v485 = vunpack.c.h.b16 %v167
    %v486 = vunpack.c.l.b16 %v168
    %v487 = vunpack.c.h.b16 %v168
    %v488 = vunpack.c.l.b16 %v169
    %v489 = vunpack.c.h.b16 %v169
    %v490 = vunpack.c.l.b16 %v170
    %v491 = vunpack.c.h.b16 %v170
    %v492 = vunpack.c.l.b16 %v171
    %v493 = vunpack.c.h.b16 %v171
    %v494 = vunpack.c.l.b16 %v172
    %v495 = vunpack.c.h.b16 %v172
    %v496 = vunpack.c.l.b16 %v173
    %v497 = vunpack.c.h.b16 %v173
    %v498 = vunpack.c.l.b16 %v174
    %v499 = vunpack.c.h.b16 %v174
    %v500 = vunpack.c.l.b16 %v175
    %v501 = vunpack.c.h.b16 %v175
    %v502 = vunpack.c.l.b16 %v176
    %v503 = vunpack.c.h.b16 %v176
    %v504 = vunpack.c.l.b16 %v177
    %v505 = vunpack.c.h.b16 %v177
    %v506 = vunpack.c.l.b16 %v178
    %v507 = vunpack.c.h.b16 %v178
    %v508 = vunpack.c.l.b16 %v179
    %v509 = vunpack.c.h.b16 %v179
    %v510 = vunpack.c.l.b16 %v180
    %v511 = vunpack.c.h.b16 %v180
    %v512 = vunpack.c.l.b16 %v181
    %v513 = vunpack.c.h.b16 %v181
    %v514 = vpack.c.b16 %v328, %v322
    %v515 = vpack.c.b16 %v329, %v323
    %v516 = vpack.c.b16 %v330, %v324
    %v517 = vpack.c.b16 %v331, %v325
    %v518 = vpack.c.b16 %v332, %v326
    %v519 = vpack.c.b16 %v333, %v327
    %v520 = vpack.c.b16 %v340, %v334
    %v521 = vpack.c.b16 %v341, %v335
    %v522 = vpack.c.b16 %v342, %v336
    %v523 = vpack.c.b16 %v343, %v337
    %v524 = vpack.c.b16 %v344, %v338
    %v525 = vpack.c.b16 %v345, %v339
    %v526 = vpack.c.b16 %v352, %v346
    %v527 = vpack.c.b16 %v353, %v347
    %v528 = vpack.c.b16 %v354, %v348
    %v529 = vpack.c.b16 %v355, %v349
    %v530 = vpack.c.b16 %v356, %v350
    %v531 = vpack.c.b16 %v357, %v351
    %v532 = vpack.c.b16 %v364, %v358
    %v533 = vpack.c.b16 %v365, %v359
    %v534 = vpack.c.b16 %v366, %v360
    %v535 = vpack.c.b16 %v367, %v361
    %v536 = vpack.c.b16 %v368, %v362
    %v537 = vpack.c.b16 %v369, %v363
    %v538 = vpack.c.b16 %v376, %v370
    %v539 = vpack.c.b16 %v377, %v371
    %v540 = vpack.c.b16 %v378, %v372
    %v541 = vpack.c.b16 %v379, %v373
    %v542 = vpack.c.b16 %v380, %v374
    %v543 = vpack.c.b16 %v381, %v375
    %v544 = vpack.c.b16 %v388, %v382
    %v545 = vpack.c.b16 %v389, %v383
    %v546 = vpack.c.b16 %v390, %v384
    %v547 = vpack.c.b16 %v391, %v385
    %v548 = vpack.c.b16 %v392, %v386
    %v549 = vpack.c.b16 %v393, %v387
    %v550 = vpack.c.b16 %v400, %v394
    %v551 = vpack.c.b16 %v401, %v395
    %v552 = vpack.c.b16 %v402, %v396
    %v553 = vpack.c.b16 %v403, %v397
    %v554 = vpack.c.b16 %v404, %v398
    %v555 = vpack.c.b16 %v405, %v399
    %v556 = vpack.c.b16 %v412, %v406
    %v557 = vpack.c.b16 %v413, %v407
    %v558 = vpack.c.b16 %v414, %v408
    %v559 = vpack.c.b16 %v415, %v409
    %v560 = vpack.c.b16 %v416, %v410
    %v561 = vpack.c.b16 %v417, %v411
    %v562 = vpack.c.b16 %v424, %v418
    %v563 = vpack.c.b16 %v425, %v419
    %v564 = vpack.c.b16 %v426, %v420
    %v565 = vpack.c.b16 %v427, %v421
    %v566 = vpack.c.b16 %v428, %v422
    %v567 = vpack.c.b16 %v429, %v423
    %v568 = vpack.c.b16 %v436, %v430
    %v569 = vpack.c.b16 %v437, %v431
    %v570 = vpack.c.b16 %v438, %v432
    %v571 = vpack.c.b16 %v439, %v433
    %v572 = vpack.c.b16 %v440, %v434
    %v573 = vpack.c.b16 %v441, %v435
    %v574 = vpack.c.b16 %v448, %v442
    %v575 = vpack.c.b16 %v449, %v443
    %v576 = vpack.c.b16 %v450, %v444
    %v577 = vpack.c.b16 %v451, %v445
    %v578 = vpack.c.b16 %v452, %v446
    %v579 = vpack.c.b16 %v453, %v447
    %v580 = vpack.c.b16 %v460, %v454
    %v581 = vpack.c.b16 %v461, %v455
    %v582 = vpack.c.b16 %v462, %v456
    %v583 = vpack.c.b16 %v463, %v457
    %v584 = vpack.c.b16 %v464, %v458
    %v585 = vpack.c.b16 %v465, %v459
    %v586 = vpack.c.b16 %v472, %v466
    %v587 = vpack.c.b16 %v473, %v467
    %v588 = vpack.c.b16 %v474, %v468
    %v589 = vpack.c.b16 %v475, %v469
    %v590 = vpack.c.b16 %v476, %v470
    %v591 = vpack.c.b16 %v477, %v471
    %v592 = vpack.c.b16 %v484, %v478
    %v593 = vpack.c.b16 %v485, %v479
    %v594 = vpack.c.b16 %v486, %v480
    %v595 = vpack.c.b16 %v487, %v481
    %v596 = vpack.c.b16 %v488, %v482
    %v597 = vpack.c.b16 %v489, %v483
    %v598 = vpack.c.b16 %v496, %v490
    %v599 = vpack.c.b16 %v497, %v491
    %v600 = vpack.c.b16 %v498, %v492
    %v601 = vpack.c.b16 %v499, %v493
    %v602 = vpack.c.b16 %v500, %v494
    %v603 = vpack.c.b16 %v501, %v495
    %v604 = vpack.c.b16 %v508, %v502
    %v605 = vpack.c.b16 %v509, %v503
    %v606 = vpack.c.b16 %v510, %v504
    %v607 = vpack.c.b16 %v511, %v505
    %v608 = vpack.c.b16 %v512, %v506
    %v609 = vpack.c.b16 %v513, %v507
    %706 = vmatprep.subr.bf16.mxu0 %v557
    %707 = vmatpush1.bf16.msra.mxu0 %v556
    %708 = vmatprep.subr.bf16.mxu0 %v551
    %709 = vmatpush1.bf16.msra.mxu0 %v550
    %710 = vmatprep.subr.bf16.mxu0 %v545
    %711 = vmatpush1.bf16.msra.mxu0 %v544
    %712 = vmatprep.subr.bf16.mxu0 %v539
    %713 = vmatpush1.bf16.msra.mxu0 %v538
    %714 = vmatprep.subr.bf16.mxu0 %v533
    %715 = vmatpush1.bf16.msra.mxu0 %v532
    %716 = vmatprep.subr.bf16.mxu0 %v527
    %717 = vmatpush1.bf16.msra.mxu0 %v526
    %718 = vmatprep.subr.bf16.mxu0 %v521
    %719 = vmatpush1.bf16.msra.mxu0 %v520
    %720 = vmatprep.subr.bf16.mxu0 %v515
    %721 = vmatpush1.bf16.msra.mxu0 %v514
    %722 = vmatprep.subr.bf16.mxu0 %v605
    %723 = vmatpush2.bf16.msra.mxu0 %v604
    %724 = vmatprep.subr.bf16.mxu0 %v599
    %725 = vmatpush2.bf16.msra.mxu0 %v598
    %726 = vmatprep.subr.bf16.mxu0 %v593
    %727 = vmatpush2.bf16.msra.mxu0 %v592
    %728 = vmatprep.subr.bf16.mxu0 %v587
    %729 = vmatpush2.bf16.msra.mxu0 %v586
    %730 = vmatprep.subr.bf16.mxu0 %v581
    %731 = vmatpush2.bf16.msra.mxu0 %v580
    %732 = vmatprep.subr.bf16.mxu0 %v575
    %733 = vmatpush2.bf16.msra.mxu0 %v574
    %734 = vmatprep.subr.bf16.mxu0 %v569
    %735 = vmatpush2.bf16.msra.mxu0 %v568
    %736 = vmatprep.subr.bf16.mxu0 %v563
    %737 = vmatpush2.bf16.msra.mxu0 %v562
    %738 = vmatprep.mubr.bf16.mxu0 %v219
    %739 = vmatmul.mubr.bf16.gmra.mxu0 %v218
    %v740 = vpop.f32.mrf.mxu0
    %v741 = vadd.f32 0.0, %v740
    %v742 = vpop.f32.mrf.mxu0
    %v743 = vadd.f32 0.0, %v742
    %v744 = vpop.f32.mrf.mxu0
    %v745 = vadd.f32 0.0, %v744
    %v746 = vpop.f32.mrf.mxu0
    %v747 = vadd.f32 0.0, %v746
    %748 = vmatprep.mubr.bf16.mxu0 %v221
    %749 = vmatmul.mubr.bf16.gmra.mxu0 %v220
    %v750 = vpop.f32.mrf.mxu0
    %v751 = vadd.f32 0.0, %v750
    %v752 = vpop.f32.mrf.mxu0
    %v753 = vadd.f32 0.0, %v752
    %v754 = vpop.f32.mrf.mxu0
    %v755 = vadd.f32 0.0, %v754
    %v756 = vpop.f32.mrf.mxu0
    %v757 = vadd.f32 0.0, %v756
    %758 = vdwg.mxu0
    %759 = vmatprep.subr.bf16.mxu0 %v559
    %760 = vmatpush1.bf16.msra.mxu0 %v558
    %761 = vmatprep.subr.bf16.mxu0 %v553
    %762 = vmatpush1.bf16.msra.mxu0 %v552
    %763 = vmatprep.subr.bf16.mxu0 %v547
    %764 = vmatpush1.bf16.msra.mxu0 %v546
    %765 = vmatprep.subr.bf16.mxu0 %v541
    %766 = vmatpush1.bf16.msra.mxu0 %v540
    %767 = vmatprep.subr.bf16.mxu0 %v535
    %768 = vmatpush1.bf16.msra.mxu0 %v534
    %769 = vmatprep.subr.bf16.mxu0 %v529
    %770 = vmatpush1.bf16.msra.mxu0 %v528
    %771 = vmatprep.subr.bf16.mxu0 %v523
    %772 = vmatpush1.bf16.msra.mxu0 %v522
    %773 = vmatprep.subr.bf16.mxu0 %v517
    %774 = vmatpush1.bf16.msra.mxu0 %v516
    %775 = vmatprep.subr.bf16.mxu0 %v607
    %776 = vmatpush2.bf16.msra.mxu0 %v606
    %777 = vmatprep.subr.bf16.mxu0 %v601
    %778 = vmatpush2.bf16.msra.mxu0 %v600
    %779 = vmatprep.subr.bf16.mxu0 %v595
    %780 = vmatpush2.bf16.msra.mxu0 %v594
    %781 = vmatprep.subr.bf16.mxu0 %v589
    %782 = vmatpush2.bf16.msra.mxu0 %v588
    %783 = vmatprep.subr.bf16.mxu0 %v583
    %784 = vmatpush2.bf16.msra.mxu0 %v582
    %785 = vmatprep.subr.bf16.mxu0 %v577
    %786 = vmatpush2.bf16.msra.mxu0 %v576
    %787 = vmatprep.subr.bf16.mxu0 %v571
    %788 = vmatpush2.bf16.msra.mxu0 %v570
    %789 = vmatprep.subr.bf16.mxu0 %v565
    %790 = vmatpush2.bf16.msra.mxu0 %v564
    %791 = vmatprep.mubr.bf16.mxu0 %v219
    %792 = vmatmul.mubr.bf16.gmra.mxu0 %v218
    %v793 = vpop.f32.mrf.mxu0
    %v794 = vadd.f32 0.0, %v793
    %v795 = vpop.f32.mrf.mxu0
    %v796 = vadd.f32 0.0, %v795
    %v797 = vpop.f32.mrf.mxu0
    %v798 = vadd.f32 0.0, %v797
    %v799 = vpop.f32.mrf.mxu0
    %v800 = vadd.f32 0.0, %v799
    %801 = vmatprep.mubr.bf16.mxu0 %v221
    %802 = vmatmul.mubr.bf16.gmra.mxu0 %v220
    %v803 = vpop.f32.mrf.mxu0
    %v804 = vadd.f32 0.0, %v803
    %v805 = vpop.f32.mrf.mxu0
    %v806 = vadd.f32 0.0, %v805
    %v807 = vpop.f32.mrf.mxu0
    %v808 = vadd.f32 0.0, %v807
    %v809 = vpop.f32.mrf.mxu0
    %v810 = vadd.f32 0.0, %v809
    %811 = vdwg.mxu0
    %812 = vmatprep.subr.bf16.mxu0 %v561
    %813 = vmatpush1.bf16.msra.mxu0 %v560
    %814 = vmatprep.subr.bf16.mxu0 %v555
    %815 = vmatpush1.bf16.msra.mxu0 %v554
    %816 = vmatprep.subr.bf16.mxu0 %v549
    %817 = vmatpush1.bf16.msra.mxu0 %v548
    %818 = vmatprep.subr.bf16.mxu0 %v543
    %819 = vmatpush1.bf16.msra.mxu0 %v542
    %820 = vmatprep.subr.bf16.mxu0 %v537
    %821 = vmatpush1.bf16.msra.mxu0 %v536
    %822 = vmatprep.subr.bf16.mxu0 %v531
    %823 = vmatpush1.bf16.msra.mxu0 %v530
    %824 = vmatprep.subr.bf16.mxu0 %v525
    %825 = vmatpush1.bf16.msra.mxu0 %v524
    %826 = vmatprep.subr.bf16.mxu0 %v519
    %827 = vmatpush1.bf16.msra.mxu0 %v518
    %828 = vmatprep.subr.bf16.mxu0 %v609
    %829 = vmatpush2.bf16.msra.mxu0 %v608
    %830 = vmatprep.subr.bf16.mxu0 %v603
    %831 = vmatpush2.bf16.msra.mxu0 %v602
    %832 = vmatprep.subr.bf16.mxu0 %v597
    %833 = vmatpush2.bf16.msra.mxu0 %v596
    %834 = vmatprep.subr.bf16.mxu0 %v591
    %835 = vmatpush2.bf16.msra.mxu0 %v590
    %836 = vmatprep.subr.bf16.mxu0 %v585
    %837 = vmatpush2.bf16.msra.mxu0 %v584
    %838 = vmatprep.subr.bf16.mxu0 %v579
    %839 = vmatpush2.bf16.msra.mxu0 %v578
    %840 = vmatprep.subr.bf16.mxu0 %v573
    %841 = vmatpush2.bf16.msra.mxu0 %v572
    %842 = vmatprep.subr.bf16.mxu0 %v567
    %843 = vmatpush2.bf16.msra.mxu0 %v566
    %844 = vmatprep.mubr.bf16.mxu0 %v219
    %845 = vmatmul.mubr.bf16.gmra.mxu0 %v218
    %v846 = vpop.f32.mrf.mxu0
    %v847 = vadd.f32 0.0, %v846
    %v848 = vpop.f32.mrf.mxu0
    %v849 = vadd.f32 0.0, %v848
    %v850 = vpop.f32.mrf.mxu0
    %v851 = vadd.f32 0.0, %v850
    %v852 = vpop.f32.mrf.mxu0
    %v853 = vadd.f32 0.0, %v852
    %854 = vmatprep.mubr.bf16.mxu0 %v221
    %855 = vmatmul.mubr.bf16.gmra.mxu0 %v220
    %v856 = vpop.f32.mrf.mxu0
    %v857 = vadd.f32 0.0, %v856
    %v858 = vpop.f32.mrf.mxu0
    %v859 = vadd.f32 0.0, %v858
    %v860 = vpop.f32.mrf.mxu0
    %v861 = vadd.f32 0.0, %v860
    %v862 = vpop.f32.mrf.mxu0
    %v863 = vadd.f32 0.0, %v862
    %864 = vdwg.mxu0
    %v865 = vadd.f32 %v182, %v741
    %v866 = vadd.f32 %v183, %v743
    %v867 = vadd.f32 %v184, %v794
    %v868 = vadd.f32 %v185, %v796
    %v869 = vadd.f32 %v186, %v847
    %v870 = vadd.f32 %v187, %v849
    %v871 = vadd.f32 %v188, %v745
    %v872 = vadd.f32 %v189, %v747
    %v873 = vadd.f32 %v190, %v798
    %v874 = vadd.f32 %v191, %v800
    %v875 = vadd.f32 %v192, %v851
    %v876 = vadd.f32 %v193, %v853
    %v877 = vadd.f32 %v194, %v751
    %v878 = vadd.f32 %v195, %v753
    %v879 = vadd.f32 %v196, %v804
    %v880 = vadd.f32 %v197, %v806
    %v881 = vadd.f32 %v198, %v857
    %v882 = vadd.f32 %v199, %v859
    %v883 = vadd.f32 %v200, %v755
    %v884 = vadd.f32 %v201, %v757
    %v885 = vadd.f32 %v202, %v808
    %v886 = vadd.f32 %v203, %v810
    %v887 = vadd.f32 %v204, %v861
    %v888 = vadd.f32 %v205, %v863
    %889 = vst [vmem:[#allocation2] sm:$0xff] %v865
    %890 = vst [vmem:[#allocation2 + $0x8] sm:$0xff] %v866
    %891 = vst [vmem:[#allocation2 + $0x10] sm:$0xff] %v867
    %892 = vst [vmem:[#allocation2 + $0x18] sm:$0xff] %v868
    %893 = vst [vmem:[#allocation2 + $0x20] sm:$0xff] %v869
    %894 = vst [vmem:[#allocation2 + $0x28] sm:$0xff] %v870
    %895 = vst [vmem:[#allocation2 + $0x30] sm:$0xff] %v871
    %896 = vst [vmem:[#allocation2 + $0x38] sm:$0xff] %v872
    %897 = vst [vmem:[#allocation2 + $0x40] sm:$0xff] %v873
    %898 = vst [vmem:[#allocation2 + $0x48] sm:$0xff] %v874
    %899 = vst [vmem:[#allocation2 + $0x50] sm:$0xff] %v875
    %900 = vst [vmem:[#allocation2 + $0x58] sm:$0xff] %v876
    %901 = vst [vmem:[#allocation2 + $0x60] sm:$0xff] %v877
    %902 = vst [vmem:[#allocation2 + $0x68] sm:$0xff] %v878
    %903 = vst [vmem:[#allocation2 + $0x70] sm:$0xff] %v879
    %904 = vst [vmem:[#allocation2 + $0x78] sm:$0xff] %v880
    %905 = vst [vmem:[#allocation2 + $0x80] sm:$0xff] %v881
    %906 = vst [vmem:[#allocation2 + $0x88] sm:$0xff] %v882
    %907 = vst [vmem:[#allocation2 + $0x90] sm:$0xff] %v883
    %908 = vst [vmem:[#allocation2 + $0x98] sm:$0xff] %v884
    %909 = vst [vmem:[#allocation2 + $0xa0] sm:$0xff] %v885
    %910 = vst [vmem:[#allocation2 + $0xa8] sm:$0xff] %v886
    %911 = vst [vmem:[#allocation2 + $0xb0] sm:$0xff] %v887
    %912 = vst [vmem:[#allocation2 + $0xb8] sm:$0xff] %v888
    // Predicated region
    $region30: #{tpu_custom_call.1} parent=1 // pred_check
      %p913 = pneg %p54
    $region31: #{tpu_custom_call.1} parent=1 // pred_check_branch
      %915 = sbr.rel (%p913) target = $region33
    $region32: #{tpu_custom_call.1} parent=1 // pred_region
      %v916 = vld [vmem:[#allocation2] sm:$0xff]
      %v917 = vld [vmem:[#allocation2 + $0x8] sm:$0xff]
      %v918 = vld [vmem:[#allocation2 + $0x10] sm:$0xff]
      %v919 = vld [vmem:[#allocation2 + $0x18] sm:$0xff]
      %v920 = vld [vmem:[#allocation2 + $0x20] sm:$0xff]
      %v921 = vld [vmem:[#allocation2 + $0x28] sm:$0xff]
      %v922 = vld [vmem:[#allocation2 + $0x30] sm:$0xff]
      %v923 = vld [vmem:[#allocation2 + $0x38] sm:$0xff]
      %v924 = vld [vmem:[#allocation2 + $0x40] sm:$0xff]
      %v925 = vld [vmem:[#allocation2 + $0x48] sm:$0xff]
      %v926 = vld [vmem:[#allocation2 + $0x50] sm:$0xff]
      %v927 = vld [vmem:[#allocation2 + $0x58] sm:$0xff]
      %v928 = vld [vmem:[#allocation2 + $0x60] sm:$0xff]
      %v929 = vld [vmem:[#allocation2 + $0x68] sm:$0xff]
      %v930 = vld [vmem:[#allocation2 + $0x70] sm:$0xff]
      %v931 = vld [vmem:[#allocation2 + $0x78] sm:$0xff]
      %v932 = vld [vmem:[#allocation2 + $0x80] sm:$0xff]
      %v933 = vld [vmem:[#allocation2 + $0x88] sm:$0xff]
      %v934 = vld [vmem:[#allocation2 + $0x90] sm:$0xff]
      %v935 = vld [vmem:[#allocation2 + $0x98] sm:$0xff]
      %v936 = vld [vmem:[#allocation2 + $0xa0] sm:$0xff]
      %v937 = vld [vmem:[#allocation2 + $0xa8] sm:$0xff]
      %v938 = vld [vmem:[#allocation2 + $0xb0] sm:$0xff]
      %v939 = vld [vmem:[#allocation2 + $0xb8] sm:$0xff]
      %v940 = vld [vmem:[#allocation8] sm:$0x3f]
      %v942 = vlaneseq
      %v943 = vshrl.u32 %v942, 7
      %v944 = vsub.s32 0, %v943
      %v945 = vrot.slane %v940, %v944
      %v946 = vlaneseq
      %v947 = vshrl.u32 %v946, 7
      %v948 = vsub.s32 1, %v947
      %v949 = vrot.slane %v940, %v948
      %v950 = vlaneseq
      %v951 = vshrl.u32 %v950, 7
      %v952 = vsub.s32 2, %v951
      %v953 = vrot.slane %v940, %v952
      %v954 = vlaneseq
      %v955 = vshrl.u32 %v954, 7
      %v956 = vsub.s32 3, %v955
      %v957 = vrot.slane %v940, %v956
      %v958 = vlaneseq
      %v959 = vshrl.u32 %v958, 7
      %v960 = vsub.s32 4, %v959
      %v961 = vrot.slane %v940, %v960
      %v962 = vlaneseq
      %v963 = vshrl.u32 %v962, 7
      %v964 = vsub.s32 5, %v963
      %v965 = vrot.slane %v940, %v964
      %v972 = vadd.f32 %v916, %v945
      %v973 = vadd.f32 %v917, %v949
      %v974 = vadd.f32 %v918, %v953
      %v975 = vadd.f32 %v919, %v957
      %v976 = vadd.f32 %v920, %v961
      %v977 = vadd.f32 %v921, %v965
      %v978 = vadd.f32 %v922, %v945
      %v979 = vadd.f32 %v923, %v949
      %v980 = vadd.f32 %v924, %v953
      %v981 = vadd.f32 %v925, %v957
      %v982 = vadd.f32 %v926, %v961
      %v983 = vadd.f32 %v927, %v965
      %v984 = vadd.f32 %v928, %v945
      %v985 = vadd.f32 %v929, %v949
      %v986 = vadd.f32 %v930, %v953
      %v987 = vadd.f32 %v931, %v957
      %v988 = vadd.f32 %v932, %v961
      %v989 = vadd.f32 %v933, %v965
      %v990 = vadd.f32 %v934, %v945
      %v991 = vadd.f32 %v935, %v949
      %v992 = vadd.f32 %v936, %v953
      %v993 = vadd.f32 %v937, %v957
      %v994 = vadd.f32 %v938, %v961
      %v995 = vadd.f32 %v939, %v965
      %v996 = vpack.c.bf16 %v978, %v972
      %v997 = vpack.c.bf16 %v979, %v973
      %v998 = vpack.c.bf16 %v980, %v974
      %v999 = vpack.c.bf16 %v981, %v975
      %v1000 = vpack.c.bf16 %v982, %v976
      %v1001 = vpack.c.bf16 %v983, %v977
      %v1002 = vpack.c.bf16 %v990, %v984
      %v1003 = vpack.c.bf16 %v991, %v985
      %v1004 = vpack.c.bf16 %v992, %v986
      %v1005 = vpack.c.bf16 %v993, %v987
      %v1006 = vpack.c.bf16 %v994, %v988
      %v1007 = vpack.c.bf16 %v995, %v989
      %v1020 = vunpack.c.l.b16 %v996
      %v1021 = vunpack.c.l.b16 %v997
      %v1022 = vunpack.c.l.b16 %v998
      %v1023 = vunpack.c.l.b16 %v999
      %v1024 = vunpack.c.l.b16 %v1000
      %v1025 = vunpack.c.l.b16 %v1001
      %v1026 = vunpack.c.h.b16 %v996
      %v1027 = vunpack.c.h.b16 %v997
      %v1028 = vunpack.c.h.b16 %v998
      %v1029 = vunpack.c.h.b16 %v999
      %v1030 = vunpack.c.h.b16 %v1000
      %v1031 = vunpack.c.h.b16 %v1001
      %v1032 = vunpack.c.l.b16 %v1002
      %v1033 = vunpack.c.l.b16 %v1003
      %v1034 = vunpack.c.l.b16 %v1004
      %v1035 = vunpack.c.l.b16 %v1005
      %v1036 = vunpack.c.l.b16 %v1006
      %v1037 = vunpack.c.l.b16 %v1007
      %v1038 = vunpack.c.h.b16 %v1002
      %v1039 = vunpack.c.h.b16 %v1003
      %v1040 = vunpack.c.h.b16 %v1004
      %v1041 = vunpack.c.h.b16 %v1005
      %v1042 = vunpack.c.h.b16 %v1006
      %v1043 = vunpack.c.h.b16 %v1007
      %v1044 = vpack.c.b16 %v1021, %v1020
      %v1045 = vpack.c.b16 %v1023, %v1022
      %v1046 = vpack.c.b16 %v1025, %v1024
      %v1047 = vpack.c.b16 %v1027, %v1026
      %v1048 = vpack.c.b16 %v1029, %v1028
      %v1049 = vpack.c.b16 %v1031, %v1030
      %v1050 = vpack.c.b16 %v1033, %v1032
      %v1051 = vpack.c.b16 %v1035, %v1034
      %v1052 = vpack.c.b16 %v1037, %v1036
      %v1053 = vpack.c.b16 %v1039, %v1038
      %v1054 = vpack.c.b16 %v1041, %v1040
      %v1055 = vpack.c.b16 %v1043, %v1042
      %1068 = vst [vmem:[#allocation9] sm:$0xff] %v1044
      %1069 = vst [vmem:[#allocation9 + $0x8] sm:$0xff] %v1045
      %1070 = vst [vmem:[#allocation9 + $0x10] sm:$0xff] %v1046
      %1071 = vst [vmem:[#allocation9 + $0x18] sm:$0xff] %v1047
      %1072 = vst [vmem:[#allocation9 + $0x20] sm:$0xff] %v1048
      %1073 = vst [vmem:[#allocation9 + $0x28] sm:$0xff] %v1049
      %1074 = vst [vmem:[#allocation9 + $0x30] sm:$0xff] %v1050
      %1075 = vst [vmem:[#allocation9 + $0x38] sm:$0xff] %v1051
      %1076 = vst [vmem:[#allocation9 + $0x40] sm:$0xff] %v1052
      %1077 = vst [vmem:[#allocation9 + $0x48] sm:$0xff] %v1053
      %1078 = vst [vmem:[#allocation9 + $0x50] sm:$0xff] %v1054
      %1079 = vst [vmem:[#allocation9 + $0x58] sm:$0xff] %v1055
    $region33: #{tpu_custom_call.1} parent=1 // pred_fallthru
      _
    // Predicated region
    $region34: #{tpu_custom_call.1} parent=1 // pred_check
      _
    $region35: #{tpu_custom_call.1} parent=1 // pred_check_branch
      %1081 = sbr.rel (0) target = $region37
    $region36: #{tpu_custom_call.1} parent=1 // pred_region
      %s1083 = ssub.s32 1536, 1536
      %1084 = vsyncadd [#allocation5], %s1083
      %s1085 = sshll.u32 [#allocation9], 4
      %s1086 = int_to_ptr.vmem [resolvable:$true] %s1085
      %1091 = dma.vmem_to_hbm [thread:$0]  %s1086, 1536, %s3, [#allocation5], 384, 384, 24
    $region37: #{tpu_custom_call.1} parent=1 // pred_fallthru
      _
    // Predicated region
    $region38: #{tpu_custom_call.1} parent=1 // pred_check
      _
    $region39: #{tpu_custom_call.1} parent=1 // pred_check_branch
      %1093 = sbr.rel (0) target = $region41
    $region40: #{tpu_custom_call.1} parent=1 // pred_region
      %1094 = dma.done [#allocation5], 1536
    $region41: #{tpu_custom_call.1} parent=1 // pred_fallthru
      _
    %1095 = vsyncpa [#allocation4], 1
    %1096 = vsyncpa [#allocation7], 1
    %1097 = vsyncpa [#allocation5], 1

</llo_original>
